<compile_context>
chip_gen: v5e
topology: v5e:2x2
jax: 0.10.0
libtpu: 0.0.40
codegen_flags: <defaults>
</compile_context>

<pallas_src>
import functools

import jax
import jax.numpy as jnp
from jax.experimental import pallas as pl
from jax.experimental.pallas import tpu as pltpu

LANE = 128
CHUNK_ROWS = 256             # 256 x 128 f32 = 128 KiB per in-kernel temp
SMALL_INPUT_BYTES = 2 << 20  # below ~2 MiB streamed, plain XLA is faster


def _round_up(x, m):
    return (x + m - 1) // m * m


def _tpu_flavor():
    """Best-effort TPU generation sniff (v7x: 2 TCs; v5e: small scoped VMEM)."""
    kind = ""
    try:
        for d in jax.devices():
            if d.platform == "tpu":
                kind = (getattr(d, "device_kind", "") or "").lower()
                break
    except Exception:
        pass
    is_v7 = ("v7" in kind) or ("7x" in kind)
    is_v5e = ("v5e" in kind) or ("v5 lite" in kind) or ("v5lite" in kind)
    return is_v7, is_v5e


def _lc_xla(d_c_enc_x, d_c_z_c):
    x = d_c_enc_x.astype(jnp.float32)
    z = d_c_z_c.astype(jnp.float32)
    return -jnp.mean(jnp.log(z) + jnp.log(1.0 - x))


def _lc_kernel(x_ref, z_ref, acc_ref, *, rows, block_rows, chunk_rows,
               inner_steps, has_ragged):
    # x_ref, z_ref: (block_rows, LANE) tiles (native dtype)
    # acc_ref:      (8, LANE) f32 output block, resident across the inner axis
    c = pl.program_id(0)
    i = pl.program_id(1)

    @pl.when(i == 0)
    def _():
        acc_ref[...] = jnp.zeros_like(acc_ref)

    block_start = (c * inner_steps + i) * block_rows
    num_chunks = block_rows // chunk_rows

    def chunk_partial(off, masked):
        if num_chunks == 1:
            x = x_ref[...]
            z = z_ref[...]
        else:
            x = x_ref[pl.ds(off, chunk_rows), :]
            z = z_ref[pl.ds(off, chunk_rows), :]
        x = x.astype(jnp.float32)
        z = z.astype(jnp.float32)
        # Two separate logs: matches torch.log(z) + torch.log(1 - x) and avoids
        # f32 underflow of the fused log(z * (1 - x)) for saturated outputs.
        term = jnp.log(z) + jnp.log(1.0 - x)
        if masked:
            # Row-granularity mask only (lane padding is value-neutral).
            row = jax.lax.broadcasted_iota(jnp.int32, term.shape, 0)
            term = jnp.where(block_start + off + row < rows, term, 0.0)
        # Fold chunk_rows -> 8 sublanes with cheap aligned VPU adds; the single
        # expensive cross-lane reduce happens once, outside the kernel.
        return term.reshape(chunk_rows // 8, 8, LANE).sum(axis=0)

    def accumulate(masked):
        if num_chunks == 1:
            acc_ref[...] += chunk_partial(0, masked)
        else:
            def body(j, carry):
                off = pl.multiple_of(j * chunk_rows, chunk_rows)
                return carry + chunk_partial(off, masked)
            acc_ref[...] += jax.lax.fori_loop(
                0, num_chunks, body, jnp.zeros((8, LANE), jnp.float32))

    if not has_ragged:
        accumulate(masked=False)
    else:
        is_full = block_start + block_rows <= rows

        @pl.when(is_full)
        def _():
            accumulate(masked=False)

        @pl.when(jnp.logical_not(is_full))
        def _():
            accumulate(masked=True)


def lc_loss(d_c_enc_x, d_c_z_c, *, force_pallas=False):
    """Pallas TPU implementation of LC.forward."""
    assert d_c_enc_x.shape == d_c_z_c.shape
    total_n = int(d_c_enc_x.size)

    itemsize_x = jnp.dtype(d_c_enc_x.dtype).itemsize
    itemsize_z = jnp.dtype(d_c_z_c.dtype).itemsize
    in_bytes = total_n * (itemsize_x + itemsize_z)
    if total_n == 0 or (not force_pallas and in_bytes < SMALL_INPUT_BYTES):
        # Launch / reshape overhead dwarfs sub-microsecond of work.
        return _lc_xla(d_c_enc_x, d_c_z_c)

    x_flat = d_c_enc_x.reshape(-1)   # row-major reshape: free (no copy)
    z_flat = d_c_z_c.reshape(-1)

    rem = total_n % LANE
    if rem:
        pad = LANE - rem
        # Neutral pad: log(z_pad) + log(1 - x_pad) == 0, so padded elements of
        # the partial last row contribute nothing (no element mask needed).
        x_flat = jnp.pad(x_flat, (0, pad), constant_values=0.0)
        z_flat = jnp.pad(z_flat, (0, pad), constant_values=1.0)
    rows = x_flat.size // LANE
    x2d = x_flat.reshape(rows, LANE)
    z2d = z_flat.reshape(rows, LANE)

    is_v7, is_v5e = _tpu_flavor()
    # 8192 rows = 4 MiB f32 per input per step (16 MiB double-buffered) fits
    # the 32 MiB scoped-VMEM default on v6e/v7x; cap at 4096 on v5e (16 MiB).
    max_block_rows = 4096 if is_v5e else 8192
    # Keep the sublane dim a multiple of the packed-dtype native tile.
    min_itemsize = min(itemsize_x, itemsize_z)
    row_align = 8 if min_itemsize >= 4 else (32 // min_itemsize)

    if rows >= max_block_rows:
        block_rows = max_block_rows
        chunk_rows = CHUNK_ROWS
    else:
        block_rows = _round_up(rows, row_align)
        chunk_rows = CHUNK_ROWS if block_rows % CHUNK_ROWS == 0 else block_rows

    total_blocks = pl.cdiv(rows, block_rows)
    num_cores = 2 if (is_v7 and total_blocks >= 2) else 1   # v7x dual-TC only
    inner_steps = pl.cdiv(total_blocks, num_cores)
    covered_rows = num_cores * inner_steps * block_rows
    has_ragged = covered_rows > rows
    last_block = total_blocks - 1

    kernel = functools.partial(
        _lc_kernel, rows=rows, block_rows=block_rows, chunk_rows=chunk_rows,
        inner_steps=inner_steps, has_ragged=has_ragged)

    def in_map(c, i):
        # Clamp so an over-provisioned (c, i) point (odd block count split over
        # 2 cores) never indexes out of bounds; its rows are masked to zero.
        return (jnp.minimum(c * inner_steps + i, last_block), 0)

    # v7x: shard the leading axis across the two TensorCores explicitly.
    # (If CORE_PARALLEL ever under-shards, a pl.core_map restructure is the
    # fallback; on 1-TC chips the axis has size 1.)
    leading_sem = pltpu.CORE_PARALLEL if num_cores > 1 else pltpu.PARALLEL

    partials = pl.pallas_call(
        kernel,
        out_shape=jax.ShapeDtypeStruct((num_cores, 8, LANE), jnp.float32),
        grid_spec=pltpu.PrefetchScalarGridSpec(
            num_scalar_prefetch=0,
            grid=(num_cores, inner_steps),
            in_specs=[
                pl.BlockSpec((block_rows, LANE), in_map),
                pl.BlockSpec((block_rows, LANE), in_map),
            ],
            out_specs=pl.BlockSpec((None, 8, LANE), lambda c, i: (c, 0, 0)),
        ),
        compiler_params=pltpu.CompilerParams(
            dimension_semantics=(leading_sem, pltpu.ARBITRARY),
            vmem_limit_bytes=(None if is_v5e else 48 * 1024 * 1024)),
    )(x2d, z2d)

    # Tiny final reduce in XLA: sum the per-core (8, 128) partials, mean, negate.
    return -jnp.sum(partials) / jnp.float32(total_n)


if __name__ == "__main__":
    key = jax.random.PRNGKey(0)
    k1, k2, k3, k4, k5, k6 = jax.random.split(key, 6)

    def ref_loss(x, z):
        x = x.astype(jnp.float32)
        z = z.astype(jnp.float32)
        return -jnp.mean(jnp.log(z) + jnp.log(1.0 - x))

    # 1) Discriminator-output-like shape (B, C, H, W) = (2, 4, 16, 16), f32.
    shape = (2, 4, 16, 16)
    x = jax.random.uniform(k1, shape, jnp.float32, minval=0.01, maxval=0.99)
    z = jax.random.uniform(k2, shape, jnp.float32, minval=0.01, maxval=0.99)
    ref = ref_loss(x, z)
    out = lc_loss(x, z, force_pallas=True)          # exercise the Pallas path
    jax.block_until_ready(out)
    assert jnp.allclose(out, ref, rtol=1e-5, atol=1e-5), (out, ref)
    out_fast = lc_loss(x, z)                        # small-input XLA fast path
    jax.block_until_ready(out_fast)
    assert jnp.allclose(out_fast, ref, rtol=1e-5, atol=1e-5), (out_fast, ref)

    # 2) Ragged size: exercises lane padding + the row-masked tail block.
    shape2 = (2, 3, 7, 11)   # 462 elements, not a multiple of 128
    x2 = jax.random.uniform(k3, shape2, jnp.float32, minval=0.01, maxval=0.99)
    z2 = jax.random.uniform(k4, shape2, jnp.float32, minval=0.01, maxval=0.99)
    out2 = lc_loss(x2, z2, force_pallas=True)
    jax.block_until_ready(out2)
    ref2 = ref_loss(x2, z2)
    assert jnp.allclose(out2, ref2, rtol=1e-5, atol=1e-5), (out2, ref2)

    # 3) Native bf16 streaming path (cast to f32 happens inside the kernel).
    x3 = jax.random.uniform(k5, shape, jnp.float32, minval=0.01,
                            maxval=0.99).astype(jnp.bfloat16)
    z3 = jax.random.uniform(k6, shape, jnp.float32, minval=0.01,
                            maxval=0.99).astype(jnp.bfloat16)
    out3 = lc_loss(x3, z3, force_pallas=True)
    jax.block_until_ready(out3)
    ref3 = ref_loss(x3, z3)
    assert jnp.allclose(out3, ref3, rtol=1e-4, atol=1e-4), (out3, ref3)

    print("KERNEL_OK")
</pallas_src>

<mosaic_0001>
module attributes {stable_mosaic.version = 11 : i64} {
  func.func @_lc_kernel(%arg0: i32, %arg1: i32, %arg2: memref<16x128xf32, #tpu.memory_space<vmem>>, %arg3: memref<16x128xf32, #tpu.memory_space<vmem>>, %arg4: memref<1x8x128xf32, #tpu.memory_space<vmem>>) attributes {dimension_semantics = [#tpu.dimension_semantics<parallel>, #tpu.dimension_semantics<arbitrary>], iteration_bounds = array<i64: 1, 1>, scalar_prefetch = 0 : i64, scratch_operands = 0 : i64, tpu.core_type = #tpu.core_type<tc>, window_params = [{transform_indices = @transform_0, window_bounds = array<i64: 16, 128>}, {transform_indices = @transform_1, window_bounds = array<i64: 16, 128>}, {transform_indices = @transform_2, window_bounds = array<i64: 1, 8, 128>}]} {
    %c0_i32 = arith.constant 0 : i32
    %0 = arith.cmpi eq, %arg1, %c0_i32 : i32
    %1 = arith.extui %0 : i1 to i32
    %c0_i32_0 = arith.constant 0 : i32
    %2 = arith.cmpi ne, %1, %c0_i32_0 : i32
    scf.if %2 {
      %cst_11 = arith.constant 0.000000e+00 : f32
      %18 = vector.broadcast %cst_11 : f32 to vector<8x128xf32>
      %c0_12 = arith.constant 0 : index
      %c0_13 = arith.constant 0 : index
      %c0_14 = arith.constant 0 : index
      %19 = vector.load %arg4[%c0_12, %c0_13, %c0_14] : memref<1x8x128xf32, #tpu.memory_space<vmem>>, vector<1x8x128xf32>
      %20 = vector.shape_cast %19 : vector<1x8x128xf32> to vector<8x128xf32>
      %21 = vector.shape_cast %18 : vector<8x128xf32> to vector<1x8x128xf32>
      tpu.vector_store %arg4[%c0_12, %c0_13, %c0_14], %21 {strides = array<i32>} : memref<1x8x128xf32, #tpu.memory_space<vmem>>, vector<1x8x128xf32>,
    } else {
    }
    %c0 = arith.constant 0 : index
    %c0_1 = arith.constant 0 : index
    %c0_2 = arith.constant 0 : index
    %3 = vector.load %arg4[%c0, %c0_1, %c0_2] : memref<1x8x128xf32, #tpu.memory_space<vmem>>, vector<1x8x128xf32>
    %4 = vector.shape_cast %3 : vector<1x8x128xf32> to vector<8x128xf32>
    %c0_3 = arith.constant 0 : index
    %c0_4 = arith.constant 0 : index
    %5 = vector.load %arg2[%c0_3, %c0_4] : memref<16x128xf32, #tpu.memory_space<vmem>>, vector<16x128xf32>
    %c0_5 = arith.constant 0 : index
    %c0_6 = arith.constant 0 : index
    %6 = vector.load %arg3[%c0_5, %c0_6] : memref<16x128xf32, #tpu.memory_space<vmem>>, vector<16x128xf32>
    %7 = math.log %6 : vector<16x128xf32>
    %cst = arith.constant 1.000000e+00 : f32
    %8 = vector.broadcast %cst : f32 to vector<16x128xf32>
    %9 = arith.subf %8, %5 : vector<16x128xf32>
    %10 = math.log %9 : vector<16x128xf32>
    %11 = arith.addf %7, %10 : vector<16x128xf32>
    %12 = vector.shape_cast %11 : vector<16x128xf32> to vector<2x8x128xf32>
    %cst_7 = arith.constant dense<0.000000e+00> : vector<8x128xf32>
    %13 = vector.multi_reduction <add>, %12, %cst_7 [0] : vector<2x8x128xf32> to vector<8x128xf32>
    %14 = arith.addf %4, %13 : vector<8x128xf32>
    %c0_8 = arith.constant 0 : index
    %c0_9 = arith.constant 0 : index
    %c0_10 = arith.constant 0 : index
    %15 = vector.load %arg4[%c0_8, %c0_9, %c0_10] : memref<1x8x128xf32, #tpu.memory_space<vmem>>, vector<1x8x128xf32>
    %16 = vector.shape_cast %15 : vector<1x8x128xf32> to vector<8x128xf32>
    %17 = vector.shape_cast %14 : vector<8x128xf32> to vector<1x8x128xf32>
    tpu.vector_store %arg4[%c0_8, %c0_9, %c0_10], %17 {strides = array<i32>} : memref<1x8x128xf32, #tpu.memory_space<vmem>>, vector<1x8x128xf32>,
    return
  }
  func.func @transform_0(%arg0: i32, %arg1: i32) -> (i32, i32) {
    %c1_i32 = arith.constant 1 : i32
    %0 = arith.muli %arg0, %c1_i32 : i32
    %1 = arith.addi %0, %arg1 : i32
    %c0_i32 = arith.constant 0 : i32
    %2 = arith.minsi %1, %c0_i32 : i32
    %c0_i32_0 = arith.constant 0 : i32
    %c0_i32_1 = arith.constant 0 : i32
    return %2, %c0_i32_0 : i32, i32
  }
  func.func @transform_1(%arg0: i32, %arg1: i32) -> (i32, i32) {
    %c1_i32 = arith.constant 1 : i32
    %0 = arith.muli %arg0, %c1_i32 : i32
    %1 = arith.addi %0, %arg1 : i32
    %c0_i32 = arith.constant 0 : i32
    %2 = arith.minsi %1, %c0_i32 : i32
    %c0_i32_0 = arith.constant 0 : i32
    %c0_i32_1 = arith.constant 0 : i32
    return %2, %c0_i32_0 : i32, i32
  }
  func.func @transform_2(%arg0: i32, %arg1: i32) -> (i32, i32, i32) {
    %c0_i32 = arith.constant 0 : i32
    %c0_i32_0 = arith.constant 0 : i32
    %c0_i32_1 = arith.constant 0 : i32
    return %arg0, %c0_i32, %c0_i32_0 : i32, i32, i32
  }
}

</mosaic_0001>

<llo_original>
// kernel: tpu_custom_call.1
$region0: #{tpu_custom_call.1}
  #allocation0 [shape = 'u32[]', space=smem, size = 0x4, offset = 0x4, fixed_abs, tag = 'smem constant byte address 0x4 - core index']
  #allocation1 [shape = 'u32[72,128]{1,0:T(1,128)}', space=vmem, size = 0x9000, scoped, tag = 'internal scratch']
  %s0 = inlined_call_operand.hbm [shape: f32[16,128], index: 0, kind: input, shape index: {}]
  %s1 = inlined_call_operand.hbm [shape: f32[16,128], index: 1, kind: input, shape index: {}]
  %s2 = inlined_call_operand.hbm [shape: f32[1,8,128], index: 2, kind: output, shape index: {}]
  %s3 = sld [smem:[#allocation0]]
  $region30: #{tpu_custom_call.1} parent=0
    _
  %s5 = ssub.s32 1, %s3
  %s6 = scalar_select 0, %s5, %s3
  $region1: #{tpu_custom_call.1} parent=0
    #allocation2 [shape = 'u8[8192]{0}', space=vmem, size = 0x2000, scoped, tag = 'input window, operand 0, single buffered']
    #allocation3 [shape = 's32[1]{0}', space=sflag, size = 0x4, scoped, tag = 'scoped memory for tpu_custom_call.1']
    #allocation4 [shape = 's32[1]{0}', space=sflag, size = 0x4, scoped, tag = 'scoped memory for tpu_custom_call.1']
    #allocation5 [shape = 'u8[8192]{0}', space=vmem, size = 0x2000, scoped, tag = 'input window, operand 1, single buffered']
    #allocation6 [shape = 's32[1]{0}', space=sflag, size = 0x4, scoped, tag = 'scoped memory for tpu_custom_call.1']
    #allocation7 [shape = 'u8[4096]{0}', space=vmem, size = 0x1000, scoped, tag = 'output window, operand 0, single buffered']
    %7 = vsyncpa [#allocation3], 0
    %8 = vsyncpa [#allocation6], 0
    %9 = vsyncpa [#allocation4], 0
    // Predicated region
    $region2: #{tpu_custom_call.1} parent=1 // pred_check
      _
    $region3: #{tpu_custom_call.1} parent=1 // pred_check_branch
      %11 = sbr.rel (0) target = $region5
    $region4: #{tpu_custom_call.1} parent=1 // pred_region
      %s12 = sadd.s32 0, 0
      %p13 = scmp.lt.s32.totalorder %s12, 0
      %s14 = scalar_select %p13, %s12, 0
      %s15 = smul.u32 2, %s14
      %17 = vsyncadd [#allocation3], 0
      %s18 = smul.addr %s15, 8
      %s19 = scalar_lea.hbm %s0, %s18
      %s20 = sshll.u32 %s19, 4
      %s21 = int_to_ptr.hbm [resolvable:$true] %s20
      %s22 = sshll.u32 [#allocation2], 4
      %s23 = int_to_ptr.vmem [resolvable:$true] %s22
      %28 = dma.hbm_to_vmem [thread:$0]  %s21, 256, %s23, [#allocation3], 128, 128, 8
    $region5: #{tpu_custom_call.1} parent=1 // pred_fallthru
      _
    // Predicated region
    $region6: #{tpu_custom_call.1} parent=1 // pred_check
      _
    $region7: #{tpu_custom_call.1} parent=1 // pred_check_branch
      %30 = sbr.rel (0) target = $region9
    $region8: #{tpu_custom_call.1} parent=1 // pred_region
      %s31 = sadd.s32 0, 0
      %p32 = scmp.lt.s32.totalorder %s31, 0
      %s33 = scalar_select %p32, %s31, 0
      %s34 = smul.u32 2, %s33
      %36 = vsyncadd [#allocation6], 0
      %s37 = smul.addr %s34, 8
      %s38 = scalar_lea.hbm %s1, %s37
      %s39 = sshll.u32 %s38, 4
      %s40 = int_to_ptr.hbm [resolvable:$true] %s39
      %s41 = sshll.u32 [#allocation5], 4
      %s42 = int_to_ptr.vmem [resolvable:$true] %s41
      %47 = dma.hbm_to_vmem [thread:$0]  %s40, 256, %s42, [#allocation6], 128, 128, 8
    $region9: #{tpu_custom_call.1} parent=1 // pred_fallthru
      _
    // Predicated region
    $region10: #{tpu_custom_call.1} parent=1 // pred_check
      _
    $region11: #{tpu_custom_call.1} parent=1 // pred_check_branch
      %49 = sbr.rel (0) target = $region13
    $region12: #{tpu_custom_call.1} parent=1 // pred_region
      %51 = dma.done [#allocation3], 256
    $region13: #{tpu_custom_call.1} parent=1 // pred_fallthru
      _
    // Predicated region
    $region14: #{tpu_custom_call.1} parent=1 // pred_check
      _
    $region15: #{tpu_custom_call.1} parent=1 // pred_check_branch
      %53 = sbr.rel (0) target = $region17
    $region16: #{tpu_custom_call.1} parent=1 // pred_region
      %55 = dma.done [#allocation6], 256
    $region17: #{tpu_custom_call.1} parent=1 // pred_fallthru
      _
    %s56 = sadd.s32 0, 0
    %p57 = scmp.lt.s32.totalorder %s56, 0
    %s58 = scalar_select %p57, %s56, 0
    %s59 = smul.u32 2, %s58
    %s60 = sadd.s32 0, 0
    %p61 = scmp.lt.s32.totalorder %s60, 0
    %s62 = scalar_select %p61, %s60, 0
    %s63 = smul.u32 2, %s62
    %p64 = scmp.eq.s32.totalorder 0, 0
    // Predicated region
    $region18: #{tpu_custom_call.1} parent=1 // pred_check
      %p65 = pneg %p64
    $region19: #{tpu_custom_call.1} parent=1 // pred_check_branch
      %67 = sbr.rel (%p65) target = $region21
    $region20: #{tpu_custom_call.1} parent=1 // pred_region
      %68 = vst [vmem:[#allocation7] sm:$0xff] 0.0
    $region21: #{tpu_custom_call.1} parent=1 // pred_fallthru
      _
    %v69 = vld [vmem:[#allocation7] sm:$0xff]
    %v70 = vld [vmem:[#allocation2] sm:$0xff]
    %v71 = vld [vmem:[#allocation2 + $0x8] sm:$0xff]
    %v72 = vld [vmem:[#allocation5] sm:$0xff]
    %v73 = vld [vmem:[#allocation5 + $0x8] sm:$0xff]
    %v74 = vlog2.pop %v72
    %v75 = vmul.f32 %v74, 0.6931472
    %v76 = vlog2.pop %v73
    %v77 = vmul.f32 %v76, 0.6931472
    %v78 = vsub.f32 1.0, %v70
    %v79 = vsub.f32 1.0, %v71
    %v80 = vlog2.pop %v78
    %v81 = vmul.f32 %v80, 0.6931472
    %v82 = vlog2.pop %v79
    %v83 = vmul.f32 %v82, 0.6931472
    %v84 = vadd.f32 %v75, %v81
    %v85 = vadd.f32 %v77, %v83
    %v86 = vadd.f32 %v84, %v85
    %v87 = vadd.f32 %v69, %v86
    %88 = vst [vmem:[#allocation7] sm:$0xff] %v87
    // Predicated region
    $region22: #{tpu_custom_call.1} parent=1 // pred_check
      _
    $region23: #{tpu_custom_call.1} parent=1 // pred_check_branch
      %90 = sbr.rel (0) target = $region25
    $region24: #{tpu_custom_call.1} parent=1 // pred_region
      %92 = vsyncadd [#allocation4], 0
      %s94 = sshll.u32 [#allocation7], 4
      %s95 = int_to_ptr.vmem [resolvable:$true] %s94
      %s96 = sshll.u32 %s2, 4
      %s97 = int_to_ptr.hbm [resolvable:$true] %s96
      %99 = dma.vmem_to_hbm [thread:$0]  %s95, 128, %s97, [#allocation4]
    $region25: #{tpu_custom_call.1} parent=1 // pred_fallthru
      _
    // Predicated region
    $region26: #{tpu_custom_call.1} parent=1 // pred_check
      _
    $region27: #{tpu_custom_call.1} parent=1 // pred_check_branch
      %101 = sbr.rel (0) target = $region29
    $region28: #{tpu_custom_call.1} parent=1 // pred_region
      %103 = dma.done [#allocation4], 128
    $region29: #{tpu_custom_call.1} parent=1 // pred_fallthru
      _
    %104 = vsyncpa [#allocation3], 1
    %105 = vsyncpa [#allocation6], 1
    %106 = vsyncpa [#allocation4], 1

</llo_original>
